<compile_context>
chip_gen: v7x
topology: tpu7x:2x2x1
jax: 0.10.0
libtpu: 0.0.40
codegen_flags: <defaults>
</compile_context>

<pallas_src>
import functools

import jax
import jax.numpy as jnp
from jax.experimental import pallas as pl
from jax.experimental.pallas import tpu as pltpu

HALO = 2        # 1 halo row per side per conv, 2 convs
LANE = 128      # lane width / channel padding quantum


def _round_up(x, m):
    return (x + m - 1) // m * m


def _block_kernel(x_ref, w1_ref, b1_ref, w2_ref, b2_ref, o_ref, *, L, TL):
    # x_ref : (1, 1, TL + 2*HALO, Cp) f32   halo'd input tile (2 rows each side)
    # w*_ref: (3*Cp, Cp)              bf16  im2col conv weights (tap-major rows)
    # b*_ref: (1, Cp)                 f32
    # o_ref : (1, TL, Cp)             f32
    t = pl.program_id(1)                      # L-tile index

    xh_f32 = x_ref[0, 0]                      # (TL+4, Cp) f32 (residual + source)
    xh_bf = xh_f32.astype(jnp.bfloat16)       # bf16 copy only for the MXU

    def conv_im2col(src_bf, w_ref, b_ref, start, rows):
        # im2col: one (rows, 3*Cp) @ (3*Cp, Cp) bf16 MXU matmul instead of
        # 3 separate K=Cp matmuls; f32 accumulation + f32 bias.
        a = jnp.concatenate(
            [src_bf[start - 1:start - 1 + rows],      # x_{l-1} tap (k=0)
             src_bf[start:start + rows],              # x_{l}   tap (k=1)
             src_bf[start + 1:start + 1 + rows]],     # x_{l+1} tap (k=2)
            axis=-1)                                  # (rows, 3*Cp) bf16
        acc = jnp.dot(a, w_ref[...], preferred_element_type=jnp.float32)
        return acc + b_ref[...]

    # ---- conv1 + relu on TL+2 rows (one extra row each side feeds conv2) ----
    h1 = conv_im2col(xh_bf, w1_ref, b1_ref, start=1, rows=TL + 2)
    # do1: nn.Dropout(0.2) is identity in eval/inference mode.
    # TODO(synk): training-mode dropout (mask + 1/0.8 scale) not implemented.
    h1 = jnp.maximum(h1, 0.0)
    # conv2 uses zero padding at the true sequence ends: rows of h1 whose
    # original index is outside [0, L) must be exactly zero.
    row = jax.lax.broadcasted_iota(jnp.int32, (TL + 2, 1), 0)
    orig = t * TL - 1 + row
    h1 = jnp.where(jnp.logical_and(orig >= 0, orig < L), h1, 0.0)

    # ---- conv2 on the TL output rows ----
    h2 = conv_im2col(h1.astype(jnp.bfloat16), w2_ref, b2_ref, start=1, rows=TL)
    # do2: identity in eval/inference mode.

    # ---- residual add + relu in f32 ----
    out = jnp.maximum(h2 + xh_f32[HALO:HALO + TL], 0.0)
    o_ref[0] = out.astype(o_ref.dtype)


def _pick_tile(L, Cp):
    """L-tile size (multiple of 8) keeping the VMEM working set bounded."""
    if Cp <= 256:
        max_tl = 1024
    elif Cp <= 512:
        max_tl = 512
    else:
        max_tl = 256
    return min(max_tl, _round_up(L, 8))


def lower_basic_block(x_ncl, w1, b1, w2, b2):
    """x_ncl: (N, Cin, L) f32, PyTorch-layout input.
       w1, w2: (Cout, Cin, 3) Conv1d weights; b1, b2: (Cout,)."""
    N, Cin, L = x_ncl.shape
    Cout = w1.shape[0]
    assert Cin == Cout, "residual add requires in_channels == out_channels"
    # TODO(synk): identity_downsample / stride>1 path not implemented
    # (module default is identity_downsample=None, stride=1).

    Cp = _round_up(max(Cin, LANE), LANE)          # lane-dense channel axis
    TL = _pick_tile(L, Cp)
    nT = (L + TL - 1) // TL
    Lp = nT * TL

    # ---- layout prep (fused XLA reshuffle; nothing re-padded in-kernel) ----
    # TODO(synk): a channels-last (N, L, C) caller could skip both HBM transposes.
    x_nlc = jnp.transpose(x_ncl, (0, 2, 1))                          # (N, L, Cin)
    x_nlc = jnp.pad(x_nlc, ((0, 0), (0, 0), (0, Cp - Cin)))          # (N, L, Cp)
    xpad = jnp.pad(x_nlc, ((0, 0), (HALO, HALO + Lp - L), (0, 0)))   # (N, Lp+4, Cp)
    if nT == 1:
        # Single tile: no halo duplication needed, staging is just a reshape.
        x_tiles = xpad[:, None, :, :]                                # (N, 1, TL+4, Cp)
    else:
        # Halo'd tiles staged contiguously so plain Blocked BlockSpecs pipeline
        # them (overlap is only 4/TL rows of extra HBM traffic).
        row_idx = (jnp.arange(nT)[:, None] * TL
                   + jnp.arange(TL + 2 * HALO)[None, :])
        x_tiles = xpad[:, row_idx, :]                                # (N, nT, TL+4, Cp)

    def prep_w(w):  # (Cout, Cin, 3) -> (3*Cp, Cp) bf16, rows = tap*Cp + cin
        wt = jnp.transpose(w, (2, 1, 0))                             # (3, Cin, Cout)
        wt = jnp.pad(wt, ((0, 0), (0, Cp - Cin), (0, Cp - Cout)))
        return wt.reshape(3 * Cp, Cp).astype(jnp.bfloat16)

    def prep_b(b):
        return jnp.pad(b, (0, Cp - Cout)).reshape(1, Cp).astype(jnp.float32)

    w1k, w2k = prep_w(w1), prep_w(w2)
    b1k, b2k = prep_b(b1), prep_b(b2)

    kernel = functools.partial(_block_kernel, L=L, TL=TL)

    out = pl.pallas_call(
        kernel,
        out_shape=jax.ShapeDtypeStruct((N, Lp, Cp), jnp.float32),
        grid_spec=pltpu.PrefetchScalarGridSpec(
            num_scalar_prefetch=0,
            grid=(N, nT),
            in_specs=[
                pl.BlockSpec((1, 1, TL + 2 * HALO, Cp), lambda n, t: (n, t, 0, 0)),
                pl.BlockSpec((3 * Cp, Cp), lambda n, t: (0, 0)),
                pl.BlockSpec((1, Cp), lambda n, t: (0, 0)),
                pl.BlockSpec((3 * Cp, Cp), lambda n, t: (0, 0)),
                pl.BlockSpec((1, Cp), lambda n, t: (0, 0)),
            ],
            out_specs=pl.BlockSpec((1, TL, Cp), lambda n, t: (n, t, 0)),
        ),
        compiler_params=pltpu.CompilerParams(
            dimension_semantics=("parallel", "parallel"),   # N and L tiles (v7x 2 TCs)
            vmem_limit_bytes=48 * 1024 * 1024,              # fits v7x 64 MiB VMEM
        ),
    )(x_tiles, w1k, b1k, w2k, b2k)

    out = out[:, :L, :Cout]                   # drop L-tile / channel padding
    return jnp.transpose(out, (0, 2, 1))      # back to (N, Cout, L)


def _reference(x_ncl, w1, b1, w2, b2):
    """Plain-JAX f32 reference with identical semantics (eval-mode dropout)."""
    def conv1d_same(x, w, b):
        xp = jnp.pad(x, ((0, 0), (0, 0), (1, 1)))
        L = x.shape[-1]
        taps = jnp.stack([xp[:, :, k:k + L] for k in range(3)], axis=-1)  # (N,Cin,L,3)
        return jnp.einsum('nclk,ock->nol', taps, w) + b[None, :, None]

    h = jax.nn.relu(conv1d_same(x_ncl, w1, b1))
    h = conv1d_same(h, w2, b2)
    return jax.nn.relu(h + x_ncl)


if __name__ == "__main__":
    N, C, L = 2, 4, 16          # in_channels == out_channels, stride=1
    key = jax.random.PRNGKey(0)
    kx, k1, k2, k3, k4 = jax.random.split(key, 5)

    x = jax.random.normal(kx, (N, C, L), dtype=jnp.float32)
    # Conv1d parameter shapes: weight (Cout, Cin, 3), bias (Cout,)
    w1 = jax.random.normal(k1, (C, C, 3), dtype=jnp.float32) * 0.1
    b1 = jax.random.normal(k2, (C,), dtype=jnp.float32) * 0.1
    w2 = jax.random.normal(k3, (C, C, 3), dtype=jnp.float32) * 0.1
    b2 = jax.random.normal(k4, (C,), dtype=jnp.float32) * 0.1

    fwd = jax.jit(lower_basic_block)          # fuse layout prep/post with the call
    y = fwd(x, w1, b1, w2, b2)
    jax.block_until_ready(y)

    y_ref = _reference(x, w1, b1, w2, b2)
    assert y.shape == (N, C, L)
    # Matmul operands are bf16 (f32 accumulation), so compare with a bf16-level
    # tolerance against the pure-f32 reference.
    assert jnp.allclose(y, y_ref, atol=2e-2, rtol=2e-2), "mismatch vs reference"

    print("KERNEL_OK")
</pallas_src>

<mosaic_0001>
module attributes {stable_mosaic.version = 11 : i64} {
  func.func @_block_kernel(%arg0: i32, %arg1: i32, %arg2: memref<1x1x20x128xf32, #tpu.memory_space<vmem>>, %arg3: memref<384x128xbf16, #tpu.memory_space<vmem>>, %arg4: memref<1x128xf32, #tpu.memory_space<vmem>>, %arg5: memref<384x128xbf16, #tpu.memory_space<vmem>>, %arg6: memref<1x128xf32, #tpu.memory_space<vmem>>, %arg7: memref<1x16x128xf32, #tpu.memory_space<vmem>>) attributes {dimension_semantics = [#tpu.dimension_semantics<parallel>, #tpu.dimension_semantics<parallel>], iteration_bounds = array<i64: 2, 1>, scalar_prefetch = 0 : i64, scratch_operands = 0 : i64, tpu.core_type = #tpu.core_type<tc>, window_params = [{transform_indices = @transform_0, window_bounds = array<i64: 1, 1, 20, 128>}, {pipeline_mode = #tpu.pipeline_mode<synchronous>, transform_indices = @transform_1, window_bounds = array<i64: 384, 128>}, {pipeline_mode = #tpu.pipeline_mode<synchronous>, transform_indices = @transform_2, window_bounds = array<i64: 1, 128>}, {pipeline_mode = #tpu.pipeline_mode<synchronous>, transform_indices = @transform_3, window_bounds = array<i64: 384, 128>}, {pipeline_mode = #tpu.pipeline_mode<synchronous>, transform_indices = @transform_4, window_bounds = array<i64: 1, 128>}, {transform_indices = @transform_5, window_bounds = array<i64: 1, 16, 128>}]} {
    %c0 = arith.constant 0 : index
    %c0_0 = arith.constant 0 : index
    %c0_1 = arith.constant 0 : index
    %c0_2 = arith.constant 0 : index
    %0 = vector.load %arg2[%c0, %c0_0, %c0_1, %c0_2] : memref<1x1x20x128xf32, #tpu.memory_space<vmem>>, vector<1x1x20x128xf32>
    %1 = vector.shape_cast %0 : vector<1x1x20x128xf32> to vector<20x128xf32>
    %2 = arith.truncf %1 : vector<20x128xf32> to vector<20x128xbf16>
    %3 = vector.extract_strided_slice %2 {offsets = [0, 0], sizes = [18, 128], strides = [1, 1]} : vector<20x128xbf16> to vector<18x128xbf16>
    %4 = vector.extract_strided_slice %2 {offsets = [1, 0], sizes = [18, 128], strides = [1, 1]} : vector<20x128xbf16> to vector<18x128xbf16>
    %5 = vector.extract_strided_slice %2 {offsets = [2, 0], sizes = [18, 128], strides = [1, 1]} : vector<20x128xbf16> to vector<18x128xbf16>
    %6 = tpu.concatenate %3, %4, %5 in 1 : vector<18x128xbf16>, vector<18x128xbf16>, vector<18x128xbf16> -> vector<18x384xbf16>
    %c0_3 = arith.constant 0 : index
    %c0_4 = arith.constant 0 : index
    %7 = vector.load %arg3[%c0_3, %c0_4] : memref<384x128xbf16, #tpu.memory_space<vmem>>, vector<384x128xbf16>
    %cst = arith.constant dense<0.000000e+00> : vector<18x128xf32>
    %8 = tpu.matmul %6, %7, %cst {dimension_numbers = #tpu.dot_dimension_numbers<[1], [0], [0], [1], [0, 0, 1, 1], [], []>} : vector<18x384xbf16>, vector<384x128xbf16>, vector<18x128xf32> -> vector<18x128xf32>
    %c0_5 = arith.constant 0 : index
    %c0_6 = arith.constant 0 : index
    %9 = vector.load %arg4[%c0_5, %c0_6] : memref<1x128xf32, #tpu.memory_space<vmem>>, vector<1x128xf32>
    %10 = vector.broadcast %9 : vector<1x128xf32> to vector<18x128xf32>
    %11 = arith.addf %8, %10 : vector<18x128xf32>
    %cst_7 = arith.constant 0.000000e+00 : f32
    %12 = vector.broadcast %cst_7 : f32 to vector<18x128xf32>
    %13 = arith.maximumf %11, %12 : vector<18x128xf32>
    %14 = tpu.iota {dimensions = array<i32: 0>} : vector<18x1xi32>
    %c16_i32 = arith.constant 16 : i32
    %15 = arith.muli %arg1, %c16_i32 : i32
    %c1_i32 = arith.constant 1 : i32
    %16 = arith.subi %15, %c1_i32 : i32
    %17 = vector.broadcast %16 : i32 to vector<18x1xi32>
    %18 = arith.addi %17, %14 : vector<18x1xi32>
    %c0_i32 = arith.constant 0 : i32
    %19 = vector.broadcast %c0_i32 : i32 to vector<18x1xi32>
    %20 = arith.cmpi sge, %18, %19 : vector<18x1xi32>
    %c16_i32_8 = arith.constant 16 : i32
    %21 = vector.broadcast %c16_i32_8 : i32 to vector<18x1xi32>
    %22 = arith.cmpi slt, %18, %21 : vector<18x1xi32>
    %23 = arith.andi %20, %22 : vector<18x1xi1>
    %cst_9 = arith.constant 0.000000e+00 : f32
    %24 = vector.shape_cast %23 : vector<18x1xi1> to vector<18x1xi1>
    %25 = vector.broadcast %24 : vector<18x1xi1> to vector<18x128xi1>
    %26 = vector.broadcast %cst_9 : f32 to vector<18x128xf32>
    %27 = arith.select %25, %13, %26 : vector<18x128xi1>, vector<18x128xf32>
    %28 = arith.truncf %27 : vector<18x128xf32> to vector<18x128xbf16>
    %29 = vector.extract_strided_slice %28 {offsets = [0, 0], sizes = [16, 128], strides = [1, 1]} : vector<18x128xbf16> to vector<16x128xbf16>
    %30 = vector.extract_strided_slice %28 {offsets = [1, 0], sizes = [16, 128], strides = [1, 1]} : vector<18x128xbf16> to vector<16x128xbf16>
    %31 = vector.extract_strided_slice %28 {offsets = [2, 0], sizes = [16, 128], strides = [1, 1]} : vector<18x128xbf16> to vector<16x128xbf16>
    %32 = tpu.concatenate %29, %30, %31 in 1 : vector<16x128xbf16>, vector<16x128xbf16>, vector<16x128xbf16> -> vector<16x384xbf16>
    %c0_10 = arith.constant 0 : index
    %c0_11 = arith.constant 0 : index
    %33 = vector.load %arg5[%c0_10, %c0_11] : memref<384x128xbf16, #tpu.memory_space<vmem>>, vector<384x128xbf16>
    %cst_12 = arith.constant dense<0.000000e+00> : vector<16x128xf32>
    %34 = tpu.matmul %32, %33, %cst_12 {dimension_numbers = #tpu.dot_dimension_numbers<[1], [0], [0], [1], [0, 0, 1, 1], [], []>} : vector<16x384xbf16>, vector<384x128xbf16>, vector<16x128xf32> -> vector<16x128xf32>
    %c0_13 = arith.constant 0 : index
    %c0_14 = arith.constant 0 : index
    %35 = vector.load %arg6[%c0_13, %c0_14] : memref<1x128xf32, #tpu.memory_space<vmem>>, vector<1x128xf32>
    %36 = vector.broadcast %35 : vector<1x128xf32> to vector<16x128xf32>
    %37 = arith.addf %34, %36 : vector<16x128xf32>
    %38 = vector.extract_strided_slice %1 {offsets = [2, 0], sizes = [16, 128], strides = [1, 1]} : vector<20x128xf32> to vector<16x128xf32>
    %39 = arith.addf %37, %38 : vector<16x128xf32>
    %cst_15 = arith.constant 0.000000e+00 : f32
    %40 = vector.broadcast %cst_15 : f32 to vector<16x128xf32>
    %41 = arith.maximumf %39, %40 : vector<16x128xf32>
    %c0_16 = arith.constant 0 : index
    %c0_17 = arith.constant 0 : index
    %c0_18 = arith.constant 0 : index
    %42 = vector.load %arg7[%c0_16, %c0_17, %c0_18] : memref<1x16x128xf32, #tpu.memory_space<vmem>>, vector<1x16x128xf32>
    %43 = vector.shape_cast %42 : vector<1x16x128xf32> to vector<16x128xf32>
    %44 = vector.shape_cast %41 : vector<16x128xf32> to vector<1x16x128xf32>
    tpu.vector_store %arg7[%c0_16, %c0_17, %c0_18], %44 {strides = array<i32>} : memref<1x16x128xf32, #tpu.memory_space<vmem>>, vector<1x16x128xf32>,
    return
  }
  func.func @transform_0(%arg0: i32, %arg1: i32) -> (i32, i32, i32, i32) {
    %c0_i32 = arith.constant 0 : i32
    %c0_i32_0 = arith.constant 0 : i32
    %c0_i32_1 = arith.constant 0 : i32
    return %arg0, %arg1, %c0_i32, %c0_i32_0 : i32, i32, i32, i32
  }
  func.func @transform_1(%arg0: i32, %arg1: i32) -> (i32, i32) {
    %c0_i32 = arith.constant 0 : i32
    %c0_i32_0 = arith.constant 0 : i32
    %c0_i32_1 = arith.constant 0 : i32
    return %c0_i32, %c0_i32_0 : i32, i32
  }
  func.func @transform_2(%arg0: i32, %arg1: i32) -> (i32, i32) {
    %c0_i32 = arith.constant 0 : i32
    %c0_i32_0 = arith.constant 0 : i32
    %c0_i32_1 = arith.constant 0 : i32
    return %c0_i32, %c0_i32_0 : i32, i32
  }
  func.func @transform_3(%arg0: i32, %arg1: i32) -> (i32, i32) {
    %c0_i32 = arith.constant 0 : i32
    %c0_i32_0 = arith.constant 0 : i32
    %c0_i32_1 = arith.constant 0 : i32
    return %c0_i32, %c0_i32_0 : i32, i32
  }
  func.func @transform_4(%arg0: i32, %arg1: i32) -> (i32, i32) {
    %c0_i32 = arith.constant 0 : i32
    %c0_i32_0 = arith.constant 0 : i32
    %c0_i32_1 = arith.constant 0 : i32
    return %c0_i32, %c0_i32_0 : i32, i32
  }
  func.func @transform_5(%arg0: i32, %arg1: i32) -> (i32, i32, i32) {
    %c0_i32 = arith.constant 0 : i32
    %c0_i32_0 = arith.constant 0 : i32
    return %arg0, %arg1, %c0_i32 : i32, i32, i32
  }
}

</mosaic_0001>

<llo_original>
// kernel: lower_basic_block.1
$region0: #{lower_basic_block.1}
  #allocation0 [shape = 'u32[]', space=smem, size = 0x4, offset = 0x4, fixed_abs, tag = 'smem constant byte address 0x4 - core index']
  #allocation1 [shape = 'u32[144,128]{1,0:T(1,128)}', space=vmem, size = 0x12000, scoped, tag = 'internal scratch']
  %s0 = inlined_call_operand.vmem [shape: f32[2,1,20,128], index: 0, kind: input, shape index: {}]
  %s1 = inlined_call_operand.vmem [shape: bf16[384,128], index: 1, kind: input, shape index: {}]
  %s2 = inlined_call_operand.vmem [shape: f32[1,128], index: 2, kind: input, shape index: {}]
  %s3 = inlined_call_operand.vmem [shape: bf16[384,128], index: 3, kind: input, shape index: {}]
  %s4 = inlined_call_operand.vmem [shape: f32[1,128], index: 4, kind: input, shape index: {}]
  %s5 = inlined_call_operand.vmem [shape: f32[2,16,128], index: 5, kind: output, shape index: {}]
  %s6 = sld [smem:[#allocation0]]
  $region53: #{lower_basic_block.1} parent=0
    _
  %s8 = ssub.s32 1, %s6
  %s9 = scalar_select 0, %s8, %s6
  loop: start=0, step=1, limit=4
  $region2: #{lower_basic_block.1} parent=0 // loop_pre_header
    _
  $region3: #{lower_basic_block.1} parent=0 // loop_header
    %s11 = sphi 0, %s15
    %p12 = scmp.ge.s32.totalorder %s11, 4
    %s18 = sphi 0, %s30
    %s19 = sphi 0, %s26
    %s20 = sphi 0, %s18
    %s21 = sphi 0, %s19
    %s22 = sphi 0, %s20
    %s23 = sphi 0, %s21
    %s35 = sphi 0, %s37
    %s38 = sphi 0, %s35
    %s39 = sphi 0, %s38
    %s55 = sphi 0, %s39
    %s59 = sphi 0, %s59
    %s61 = sphi 0, %s59
    %s62 = sphi 0, %s61
    %s76 = sphi 0, %s62
    %s80 = sphi 0, %s80
    %s82 = sphi 0, %s80
    %s83 = sphi 0, %s82
    %s97 = sphi 0, %s83
    %s101 = sphi 0, %s101
    %s103 = sphi 0, %s101
    %s104 = sphi 0, %s103
    %s118 = sphi 0, %s104
    %s122 = sphi 0, %s122
    %s124 = sphi 0, %s122
    %s125 = sphi 0, %s124
    %s139 = sphi 0, %s125
    %s147 = sphi 0, %s149
    %s150 = sphi 0, %s147
    %s151 = sphi 0, %s150
    %s167 = sphi 0, %s151
  $region4: #{lower_basic_block.1} parent=0 // loop_header_branch
    %14 = sbr.rel (%p12) target = $region8
  $region5: #{lower_basic_block.1} parent=0 // loop_body
    %s16 = ssub.s32 %s11, 1
    %s17 = ssub.s32 %s11, 2
    %s24 = sadd.s32 1, %s19
    %p25 = scmp.ge.s32.totalorder %s24, 1
    %s26 = scalar_select %p25, 0, %s24
    %s27 = sadd.s32 1, %s18
    %s28 = scalar_select %p25, %s27, %s18
    %p29 = scmp.ge.s32.totalorder %s28, 2
    %s30 = scalar_select %p29, 0, %s28
    %s31 = ssub.s32 %s18, %s30
    %s32 = ssub.s32 %s19, %s26
    %s33 = sor.u32 %s31, %s32
    %p34 = scmp.eq.s32.totalorder %s33, 0
    %s36 = sadd.s32 %s35, 1
    %s37 = scalar_select %p34, %s35, %s36
    %p40 = pneg %p34
    %p41 = scmp.eq.s32.totalorder %s11, 1
    %p42 = por %p40, %p41
    %p43 = scmp.ne.s32.totalorder %s35, %s38
    %p44 = scmp.eq.s32.totalorder %s11, 0
    %p45 = por %p43, %p44
    %p46 = scmp.ne.s32.totalorder %s35, %s38
    %p47 = scmp.eq.s32.totalorder %s16, 1
    %p48 = por %p46, %p47
    %p49 = scmp.ne.s32.totalorder %s38, %s39
    %p50 = scmp.eq.s32.totalorder %s16, 0
    %p51 = por %p49, %p50
    %p52 = scmp.ne.s32.totalorder %s38, %s39
    %p53 = scmp.eq.s32.totalorder %s17, 1
    %p54 = por %p52, %p53
    %p56 = scmp.ne.s32.totalorder %s39, %s55
    %p57 = scmp.eq.s32.totalorder %s17, 0
    %p58 = por %p56, %p57
    %s60 = sadd.s32 %s59, 1
    %p63 = scmp.eq.s32.totalorder %s11, 1
    %p64 = scmp.ne.s32.totalorder %s59, %s61
    %p65 = scmp.eq.s32.totalorder %s11, 0
    %p66 = por %p64, %p65
    %p67 = scmp.ne.s32.totalorder %s59, %s61
    %p68 = scmp.eq.s32.totalorder %s16, 1
    %p69 = por %p67, %p68
    %p70 = scmp.ne.s32.totalorder %s61, %s62
    %p71 = scmp.eq.s32.totalorder %s16, 0
    %p72 = por %p70, %p71
    %p73 = scmp.ne.s32.totalorder %s61, %s62
    %p74 = scmp.eq.s32.totalorder %s17, 1
    %p75 = por %p73, %p74
    %p77 = scmp.ne.s32.totalorder %s62, %s76
    %p78 = scmp.eq.s32.totalorder %s17, 0
    %p79 = por %p77, %p78
    %s81 = sadd.s32 %s80, 1
    %p84 = scmp.eq.s32.totalorder %s11, 1
    %p85 = scmp.ne.s32.totalorder %s80, %s82
    %p86 = scmp.eq.s32.totalorder %s11, 0
    %p87 = por %p85, %p86
    %p88 = scmp.ne.s32.totalorder %s80, %s82
    %p89 = scmp.eq.s32.totalorder %s16, 1
    %p90 = por %p88, %p89
    %p91 = scmp.ne.s32.totalorder %s82, %s83
    %p92 = scmp.eq.s32.totalorder %s16, 0
    %p93 = por %p91, %p92
    %p94 = scmp.ne.s32.totalorder %s82, %s83
    %p95 = scmp.eq.s32.totalorder %s17, 1
    %p96 = por %p94, %p95
    %p98 = scmp.ne.s32.totalorder %s83, %s97
    %p99 = scmp.eq.s32.totalorder %s17, 0
    %p100 = por %p98, %p99
    %s102 = sadd.s32 %s101, 1
    %p105 = scmp.eq.s32.totalorder %s11, 1
    %p106 = scmp.ne.s32.totalorder %s101, %s103
    %p107 = scmp.eq.s32.totalorder %s11, 0
    %p108 = por %p106, %p107
    %p109 = scmp.ne.s32.totalorder %s101, %s103
    %p110 = scmp.eq.s32.totalorder %s16, 1
    %p111 = por %p109, %p110
    %p112 = scmp.ne.s32.totalorder %s103, %s104
    %p113 = scmp.eq.s32.totalorder %s16, 0
    %p114 = por %p112, %p113
    %p115 = scmp.ne.s32.totalorder %s103, %s104
    %p116 = scmp.eq.s32.totalorder %s17, 1
    %p117 = por %p115, %p116
    %p119 = scmp.ne.s32.totalorder %s104, %s118
    %p120 = scmp.eq.s32.totalorder %s17, 0
    %p121 = por %p119, %p120
    %s123 = sadd.s32 %s122, 1
    %p126 = scmp.eq.s32.totalorder %s11, 1
    %p127 = scmp.ne.s32.totalorder %s122, %s124
    %p128 = scmp.eq.s32.totalorder %s11, 0
    %p129 = por %p127, %p128
    %p130 = scmp.ne.s32.totalorder %s122, %s124
    %p131 = scmp.eq.s32.totalorder %s16, 1
    %p132 = por %p130, %p131
    %p133 = scmp.ne.s32.totalorder %s124, %s125
    %p134 = scmp.eq.s32.totalorder %s16, 0
    %p135 = por %p133, %p134
    %p136 = scmp.ne.s32.totalorder %s124, %s125
    %p137 = scmp.eq.s32.totalorder %s17, 1
    %p138 = por %p136, %p137
    %p140 = scmp.ne.s32.totalorder %s125, %s139
    %p141 = scmp.eq.s32.totalorder %s17, 0
    %p142 = por %p140, %p141
    %s143 = ssub.s32 %s18, %s30
    %s144 = ssub.s32 %s19, %s26
    %s145 = sor.u32 %s143, %s144
    %p146 = scmp.eq.s32.totalorder %s145, 0
    %s148 = sadd.s32 %s147, 1
    %s149 = scalar_select %p146, %s147, %s148
    %p152 = pneg %p146
    %p153 = scmp.eq.s32.totalorder %s11, 1
    %p154 = por %p152, %p153
    %p155 = scmp.ne.s32.totalorder %s147, %s150
    %p156 = scmp.eq.s32.totalorder %s11, 0
    %p157 = por %p155, %p156
    %p158 = scmp.ne.s32.totalorder %s147, %s150
    %p159 = scmp.eq.s32.totalorder %s16, 1
    %p160 = por %p158, %p159
    %p161 = scmp.ne.s32.totalorder %s150, %s151
    %p162 = scmp.eq.s32.totalorder %s16, 0
    %p163 = por %p161, %p162
    %p164 = scmp.ne.s32.totalorder %s150, %s151
    %p165 = scmp.eq.s32.totalorder %s17, 1
    %p166 = por %p164, %p165
    %p168 = scmp.ne.s32.totalorder %s151, %s167
    %p169 = scmp.eq.s32.totalorder %s17, 0
    %p170 = por %p168, %p169
    %p171 = scmp.le.s32.totalorder 1, %s11
    %p172 = scmp.lt.s32.totalorder %s11, 3
    %p173 = pnand %p171, %p172
    %p174 = pneg %p173
    // Predicated region
    $region9: #{lower_basic_block.1} parent=5 // pred_check
      _
    $region10: #{lower_basic_block.1} parent=5 // pred_check_branch
      %176 = sbr.rel (%p173) target = $region12
    $region11: #{lower_basic_block.1} parent=5 // pred_region
      %s177 = ssub.s32 %s11, 1
      // Predicated region
      $region13: #{lower_basic_block.1} parent=11 // pred_check
        %p178 = pneg %p72
      $region14: #{lower_basic_block.1} parent=11 // pred_check_branch
        %180 = sbr.rel (%p178) target = $region16
      $region15: #{lower_basic_block.1} parent=11 // pred_region
        _
      $region16: #{lower_basic_block.1} parent=11 // pred_fallthru
        _
      // Predicated region
      $region17: #{lower_basic_block.1} parent=11 // pred_check
        %p181 = pneg %p93
      $region18: #{lower_basic_block.1} parent=11 // pred_check_branch
        %183 = sbr.rel (%p181) target = $region20
      $region19: #{lower_basic_block.1} parent=11 // pred_region
        _
      $region20: #{lower_basic_block.1} parent=11 // pred_fallthru
        _
      // Predicated region
      $region21: #{lower_basic_block.1} parent=11 // pred_check
        %p184 = pneg %p114
      $region22: #{lower_basic_block.1} parent=11 // pred_check_branch
        %186 = sbr.rel (%p184) target = $region24
      $region23: #{lower_basic_block.1} parent=11 // pred_region
        _
      $region24: #{lower_basic_block.1} parent=11 // pred_fallthru
        _
      // Predicated region
      $region25: #{lower_basic_block.1} parent=11 // pred_check
        %p187 = pneg %p135
      $region26: #{lower_basic_block.1} parent=11 // pred_check_branch
        %189 = sbr.rel (%p187) target = $region28
      $region27: #{lower_basic_block.1} parent=11 // pred_region
        _
      $region28: #{lower_basic_block.1} parent=11 // pred_fallthru
        _
    $region12: #{lower_basic_block.1} parent=5 // pred_fallthru
      _
    %p190 = scmp.lt.s32.totalorder %s11, 2
    // Predicated region
    $region29: #{lower_basic_block.1} parent=5 // pred_check
      %p191 = pneg %p190
    $region30: #{lower_basic_block.1} parent=5 // pred_check_branch
      %193 = sbr.rel (%p191) target = $region32
    $region31: #{lower_basic_block.1} parent=5 // pred_region
      // Predicated region
      $region33: #{lower_basic_block.1} parent=31 // pred_check
        %p194 = pneg %p45
      $region34: #{lower_basic_block.1} parent=31 // pred_check_branch
        %196 = sbr.rel (%p194) target = $region36
      $region35: #{lower_basic_block.1} parent=31 // pred_region
        %p197 = scmp.lt.s32.totalorder %s18, 1
        %s198 = scalar_select %p197, %s18, 1
        %p199 = scmp.lt.s32.totalorder %s19, 0
        %s200 = scalar_select %p199, %s19, 0
        %s201 = smul.addr %s200, 3
        %s202 = smul.addr %s198, 3
        %s203 = sadd.s32 %s201, %s202
        %s204 = smul.addr %s203, 8
        %s205 = scalar_lea.vmem %s0, %s204
      $region36: #{lower_basic_block.1} parent=31 // pred_fallthru
        _
    $region32: #{lower_basic_block.1} parent=5 // pred_fallthru
      _
    %p206 = scmp.le.s32.totalorder 1, %s11
    %p207 = scmp.lt.s32.totalorder %s11, 3
    %p208 = pnand %p206, %p207
    %p209 = pneg %p208
    // Predicated region
    $region37: #{lower_basic_block.1} parent=5 // pred_check
      _
    $region38: #{lower_basic_block.1} parent=5 // pred_check_branch
      %211 = sbr.rel (%p208) target = $region40
    $region39: #{lower_basic_block.1} parent=5 // pred_region
      %s212 = ssub.s32 %s11, 1
      %p213 = scmp.lt.s32.totalorder %s20, 1
      %s214 = scalar_select %p213, %s20, 1
      %p215 = scmp.lt.s32.totalorder %s21, 0
      %s216 = scalar_select %p215, %s21, 0
      %s217 = smul.addr %s216, 3
      %s218 = smul.addr %s214, 3
      %s219 = sadd.s32 %s217, %s218
      %s220 = smul.addr %s219, 8
      %s221 = scalar_lea.vmem %s0, %s220
      %p222 = pneg %p51
      %p223 = pneg %p48
      %p224 = pneg %p72
      %p225 = pneg %p69
      %p226 = pneg %p93
      %p227 = pneg %p90
      %p228 = pneg %p114
      %p229 = pneg %p111
      %p230 = pneg %p135
      %p231 = pneg %p132
      %p232 = pneg %p163
      %p233 = pneg %p160
      %s234 = smul.u32 2, %s21
      %p235 = scmp.lt.s32.totalorder %s20, 1
      %s236 = scalar_select %p235, %s20, 1
      %p237 = scmp.lt.s32.totalorder %s234, 1
      %s238 = scalar_select %p237, %s234, 1
      %s239 = smul.addr %s236, 2
      %s240 = sadd.s32 %s238, %s239
      %s241 = smul.addr %s240, 8
      %s242 = scalar_lea.vmem %s5, %s241
      %p243 = scmp.lt.s32.totalorder %s20, 1
      %s244 = scalar_select %p243, %s20, 1
      %p245 = scmp.lt.s32.totalorder %s21, 0
      %s246 = scalar_select %p245, %s21, 0
      %s247 = smul.addr %s246, 3
      %s248 = smul.addr %s244, 3
      %s249 = sadd.s32 %s247, %s248
      %s250 = smul.addr %s249, 8
      %s251 = scalar_lea.vmem %s0, %s250
      %s252 = smul.u32 2, %s21
      %p253 = scmp.lt.s32.totalorder %s20, 1
      %s254 = scalar_select %p253, %s20, 1
      %p255 = scmp.lt.s32.totalorder %s252, 1
      %s256 = scalar_select %p255, %s252, 1
      %s257 = smul.addr %s254, 2
      %s258 = sadd.s32 %s256, %s257
      %s259 = smul.addr %s258, 8
      %s260 = scalar_lea.vmem %s5, %s259
      %s261 = smul.u32 2, %s21
      %v263 = vld [vmem:[%s251] sm:$0xff]
      %v264 = vld [vmem:[%s251 + $0x8] sm:$0xff]
      %v265 = vld [vmem:[%s251 + $0x10] sm:$0xf]
      %v266 = vpack.c.bf16 %v264, %v263
      %v267 = vpack.c.bf16 %v265, %v265
      %vm268 = vsmask.f32 7424
      %v270 = vshrl.u32 %v266, 16
      %v272 = vshll.u32 %v266, 16
      %v274 = vrot.slane %v272, 1
      %v275 = vor.u32 %v270, %v274
      %v277 = vshll.u32 %v267, 16
      %v279 = vrot.slane %v277, 1
      %v280 = vsel %vm268, %v275, %v279
      %v281 = vshrl.u32 %v267, 16
      %v283 = vor.u32 %v281, %v279
      %vm288 = vcmask 1046528
      %v289 = vrot.slane %v266, 1
      %v290 = vrot.slane %v267, 1
      %v291 = vsel %vm288, %v289, %v290
      %v294 = vld [vmem:[%s1] sm:$0xf]
      %v295 = vld [vmem:[%s1 + $0x4] sm:$0xf]
      %v296 = vld [vmem:[%s1 + $0x8] sm:$0xf]
      %v297 = vld [vmem:[%s1 + $0xc] sm:$0xf]
      %v298 = vld [vmem:[%s1 + $0x10] sm:$0xf]
      %v299 = vld [vmem:[%s1 + $0x14] sm:$0xf]
      %v300 = vld [vmem:[%s1 + $0x18] sm:$0xf]
      %v301 = vld [vmem:[%s1 + $0x1c] sm:$0xf]
      %v302 = vld [vmem:[%s1 + $0x20] sm:$0xf]
      %v303 = vld [vmem:[%s1 + $0x24] sm:$0xf]
      %v304 = vld [vmem:[%s1 + $0x28] sm:$0xf]
      %v305 = vld [vmem:[%s1 + $0x2c] sm:$0xf]
      %v306 = vld [vmem:[%s1 + $0x30] sm:$0xf]
      %v307 = vld [vmem:[%s1 + $0x34] sm:$0xf]
      %v308 = vld [vmem:[%s1 + $0x38] sm:$0xf]
      %v309 = vld [vmem:[%s1 + $0x3c] sm:$0xf]
      %v310 = vld [vmem:[%s1 + $0x40] sm:$0xf]
      %v311 = vld [vmem:[%s1 + $0x44] sm:$0xf]
      %v312 = vld [vmem:[%s1 + $0x48] sm:$0xf]
      %v313 = vld [vmem:[%s1 + $0x4c] sm:$0xf]
      %v314 = vld [vmem:[%s1 + $0x50] sm:$0xf]
      %v315 = vld [vmem:[%s1 + $0x54] sm:$0xf]
      %v316 = vld [vmem:[%s1 + $0x58] sm:$0xf]
      %v317 = vld [vmem:[%s1 + $0x5c] sm:$0xf]
      %v318 = vld [vmem:[%s1 + $0x60] sm:$0xf]
      %v319 = vld [vmem:[%s1 + $0x64] sm:$0xf]
      %v320 = vld [vmem:[%s1 + $0x68] sm:$0xf]
      %v321 = vld [vmem:[%s1 + $0x6c] sm:$0xf]
      %v322 = vld [vmem:[%s1 + $0x70] sm:$0xf]
      %v323 = vld [vmem:[%s1 + $0x74] sm:$0xf]
      %v324 = vld [vmem:[%s1 + $0x78] sm:$0xf]
      %v325 = vld [vmem:[%s1 + $0x7c] sm:$0xf]
      %v326 = vld [vmem:[%s1 + $0x80] sm:$0xf]
      %v327 = vld [vmem:[%s1 + $0x84] sm:$0xf]
      %v328 = vld [vmem:[%s1 + $0x88] sm:$0xf]
      %v329 = vld [vmem:[%s1 + $0x8c] sm:$0xf]
      %v330 = vld [vmem:[%s1 + $0x90] sm:$0xf]
      %v331 = vld [vmem:[%s1 + $0x94] sm:$0xf]
      %v332 = vld [vmem:[%s1 + $0x98] sm:$0xf]
      %v333 = vld [vmem:[%s1 + $0x9c] sm:$0xf]
      %v334 = vld [vmem:[%s1 + $0xa0] sm:$0xf]
      %v335 = vld [vmem:[%s1 + $0xa4] sm:$0xf]
      %v336 = vld [vmem:[%s1 + $0xa8] sm:$0xf]
      %v337 = vld [vmem:[%s1 + $0xac] sm:$0xf]
      %v338 = vld [vmem:[%s1 + $0xb0] sm:$0xf]
      %v339 = vld [vmem:[%s1 + $0xb4] sm:$0xf]
      %v340 = vld [vmem:[%s1 + $0xb8] sm:$0xf]
      %v341 = vld [vmem:[%s1 + $0xbc] sm:$0xf]
      %v342 = vld [vmem:[%s2] sm:$0x1]
      %v344 = vlaneseq
      %v345 = vshrl.u32 %v344, 7
      %v346 = vsub.s32 0, %v345
      %v347 = vrot.slane %v342, %v346
      %v397 = vunpack.c.l.b16 %v294
      %v398 = vunpack.c.l.b16 %v295
      %v399 = vunpack.c.l.b16 %v296
      %v400 = vunpack.c.l.b16 %v297
      %v401 = vunpack.c.l.b16 %v298
      %v402 = vunpack.c.l.b16 %v299
      %v403 = vunpack.c.l.b16 %v300
      %v404 = vunpack.c.l.b16 %v301
      %v405 = vunpack.c.l.b16 %v302
      %v406 = vunpack.c.l.b16 %v303
      %v407 = vunpack.c.l.b16 %v304
      %v408 = vunpack.c.l.b16 %v305
      %v409 = vunpack.c.l.b16 %v306
      %v410 = vunpack.c.l.b16 %v307
      %v411 = vunpack.c.l.b16 %v308
      %v412 = vunpack.c.l.b16 %v309
      %v413 = vunpack.c.l.b16 %v310
      %v414 = vunpack.c.l.b16 %v311
      %v415 = vunpack.c.l.b16 %v312
      %v416 = vunpack.c.l.b16 %v313
      %v417 = vunpack.c.l.b16 %v314
      %v418 = vunpack.c.l.b16 %v315
      %v419 = vunpack.c.l.b16 %v316
      %v420 = vunpack.c.l.b16 %v317
      %v421 = vunpack.c.l.b16 %v318
      %v422 = vunpack.c.l.b16 %v319
      %v423 = vunpack.c.l.b16 %v320
      %v424 = vunpack.c.l.b16 %v321
      %v425 = vunpack.c.l.b16 %v322
      %v426 = vunpack.c.l.b16 %v323
      %v427 = vunpack.c.l.b16 %v324
      %v428 = vunpack.c.l.b16 %v325
      %v429 = vunpack.c.l.b16 %v326
      %v430 = vunpack.c.l.b16 %v327
      %v431 = vunpack.c.l.b16 %v328
      %v432 = vunpack.c.l.b16 %v329
      %v433 = vunpack.c.l.b16 %v330
      %v434 = vunpack.c.l.b16 %v331
      %v435 = vunpack.c.l.b16 %v332
      %v436 = vunpack.c.l.b16 %v333
      %v437 = vunpack.c.l.b16 %v334
      %v438 = vunpack.c.l.b16 %v335
      %v439 = vunpack.c.l.b16 %v336
      %v440 = vunpack.c.l.b16 %v337
      %v441 = vunpack.c.l.b16 %v338
      %v442 = vunpack.c.l.b16 %v339
      %v443 = vunpack.c.l.b16 %v340
      %v444 = vunpack.c.l.b16 %v341
      %v445 = vpack.c.b16 %v398, %v397
      %v446 = vpack.c.b16 %v400, %v399
      %v447 = vpack.c.b16 %v402, %v401
      %v448 = vpack.c.b16 %v404, %v403
      %v449 = vpack.c.b16 %v406, %v405
      %v450 = vpack.c.b16 %v408, %v407
      %v451 = vpack.c.b16 %v410, %v409
      %v452 = vpack.c.b16 %v412, %v411
      %v453 = vpack.c.b16 %v414, %v413
      %v454 = vpack.c.b16 %v416, %v415
      %v455 = vpack.c.b16 %v418, %v417
      %v456 = vpack.c.b16 %v420, %v419
      %v457 = vpack.c.b16 %v422, %v421
      %v458 = vpack.c.b16 %v424, %v423
      %v459 = vpack.c.b16 %v426, %v425
      %v460 = vpack.c.b16 %v428, %v427
      %v461 = vpack.c.b16 %v430, %v429
      %v462 = vpack.c.b16 %v432, %v431
      %v463 = vpack.c.b16 %v434, %v433
      %v464 = vpack.c.b16 %v436, %v435
      %v465 = vpack.c.b16 %v438, %v437
      %v466 = vpack.c.b16 %v440, %v439
      %v467 = vpack.c.b16 %v442, %v441
      %v468 = vpack.c.b16 %v444, %v443
      %493 = vmatprep.subr.bf16.mxu0 0
      %494 = vmatpush1.bf16.msra.mxu0 %v445
      %495 = vmatprep.subr.bf16.mxu0 0
      %496 = vmatpush1.bf16.msra.mxu0 %v446
      %497 = vmatprep.subr.bf16.mxu0 0
      %498 = vmatpush1.bf16.msra.mxu0 %v447
      %499 = vmatprep.subr.bf16.mxu0 0
      %500 = vmatpush1.bf16.msra.mxu0 %v448
      %501 = vmatprep.subr.bf16.mxu0 0
      %502 = vmatpush1.bf16.msra.mxu0 %v449
      %503 = vmatprep.subr.bf16.mxu0 0
      %504 = vmatpush1.bf16.msra.mxu0 %v450
      %505 = vmatprep.subr.bf16.mxu0 0
      %506 = vmatpush1.bf16.msra.mxu0 %v451
      %507 = vmatprep.subr.bf16.mxu0 0
      %508 = vmatpush1.bf16.msra.mxu0 %v452
      %509 = vmatprep.subr.bf16.mxu0 0
      %510 = vmatpush1.bf16.msra.mxu0 %v453
      %511 = vmatprep.subr.bf16.mxu0 0
      %512 = vmatpush1.bf16.msra.mxu0 %v454
      %513 = vmatprep.subr.bf16.mxu0 0
      %514 = vmatpush1.bf16.msra.mxu0 %v455
      %515 = vmatprep.subr.bf16.mxu0 0
      %516 = vmatpush1.bf16.msra.mxu0 %v456
      %517 = vmatprep.subr.bf16.mxu0 0
      %518 = vmatpush1.bf16.msra.mxu0 %v457
      %519 = vmatprep.subr.bf16.mxu0 0
      %520 = vmatpush1.bf16.msra.mxu0 %v458
      %521 = vmatprep.subr.bf16.mxu0 0
      %522 = vmatpush1.bf16.msra.mxu0 %v459
      %523 = vmatprep.subr.bf16.mxu0 0
      %524 = vmatpush1.bf16.msra.mxu0 %v460
      %525 = vmatprep.mubr.bf16.mxu0 %v280
      %526 = vmatmul.mubr.bf16.gmra.mrb[0].mxu0 %v266
      %v527 = vpop.f32.mrb[0].mxu0
      %v528 = vadd.f32 %v347, %v527
      %v529 = vpop.f32.mrb[0].mxu0
      %v530 = vpop.f32.mrb[0].mxu0
      %v531 = vadd.f32 %v347, %v530
      %v532 = vpop.f32.mrb[0].mxu0
      %533 = vmatprep.mubr.bf16.mxu0 %v283
      %534 = vmatmul.mubr.bf16.gmra.mrb[0].mxu0 %v267
      %v535 = vpop.f32.mrb[0].mxu0
      %v536 = vadd.f32 %v347, %v535
      %v537 = vpop.f32.mrb[0].mxu0
      %v538 = vpop.f32.mrb[0].mxu0
      %v539 = vpop.f32.mrb[0].mxu0
      %540 = vdwg.mxu0
      %541 = vmatprep.subr.bf16.mxu0 0
      %542 = vmatpush1.bf16.msra.mxu0 %v461
      %543 = vmatprep.subr.bf16.mxu0 0
      %544 = vmatpush1.bf16.msra.mxu0 %v462
      %545 = vmatprep.subr.bf16.mxu0 0
      %546 = vmatpush1.bf16.msra.mxu0 %v463
      %547 = vmatprep.subr.bf16.mxu0 0
      %548 = vmatpush1.bf16.msra.mxu0 %v464
      %549 = vmatprep.subr.bf16.mxu0 0
      %550 = vmatpush1.bf16.msra.mxu0 %v465
      %551 = vmatprep.subr.bf16.mxu0 0
      %552 = vmatpush1.bf16.msra.mxu0 %v466
      %553 = vmatprep.subr.bf16.mxu0 0
      %554 = vmatpush1.bf16.msra.mxu0 %v467
      %555 = vmatprep.subr.bf16.mxu0 0
      %556 = vmatpush1.bf16.msra.mxu0 %v468
      %557 = vmatprep.subr.bf16.mxu0 0
      %558 = vmatpush1.bf16.msra.mxu0 0
      %559 = vmatprep.subr.bf16.mxu0 0
      %560 = vmatpush1.bf16.msra.mxu0 0
      %561 = vmatprep.subr.bf16.mxu0 0
      %562 = vmatpush1.bf16.msra.mxu0 0
      %563 = vmatprep.subr.bf16.mxu0 0
      %564 = vmatpush1.bf16.msra.mxu0 0
      %565 = vmatprep.subr.bf16.mxu0 0
      %566 = vmatpush1.bf16.msra.mxu0 0
      %567 = vmatprep.subr.bf16.mxu0 0
      %568 = vmatpush1.bf16.msra.mxu0 0
      %569 = vmatprep.subr.bf16.mxu0 0
      %570 = vmatpush1.bf16.msra.mxu0 0
      %571 = vmatprep.subr.bf16.mxu0 0
      %572 = vmatpush1.bf16.msra.mxu0 0
      %573 = vmatprep.mubr.bf16.mxu0 0
      %574 = vmatmul.mubr.bf16.gmra.mrb[0].mxu0 %v291
      %v575 = vpop.f32.mrb[0].mxu0
      %v576 = vadd.f32 %v528, %v575
      %v577 = vpop.f32.mrb[0].mxu0
      %v578 = vpop.f32.mrb[0].mxu0
      %v579 = vadd.f32 %v531, %v578
      %v580 = vpop.f32.mrb[0].mxu0
      %581 = vmatprep.mubr.bf16.mxu0 0
      %582 = vmatmul.mubr.bf16.gmra.mrb[0].mxu0 %v290
      %v583 = vpop.f32.mrb[0].mxu0
      %v584 = vadd.f32 %v536, %v583
      %v585 = vpop.f32.mrb[0].mxu0
      %v586 = vpop.f32.mrb[0].mxu0
      %v587 = vpop.f32.mrb[0].mxu0
      %588 = vdwg.mxu0
      %v589 = vmax.f32 %v576, 0.0
      %v590 = vmax.f32 %v579, 0.0
      %v591 = vmax.f32 %v584, 0.0
      %v592 = vlaneseq
      %v593 = vshrl.u32 %v592, 7
      %v594 = vadd.s32 %v593, 8
      %v595 = vadd.s32 %v593, 16
      %s596 = smul.u32 %s21, 16
      %s597 = ssub.s32 %s596, 1
      %v598 = vstv %s597
      %v599 = vadd.s32 %v598, %v593
      %v600 = vadd.s32 %v598, %v594
      %v601 = vadd.s32 %v598, %v595
      %vm602 = vcmp.ge.s32.totalorder %v599, 0
      %vm603 = vcmp.ge.s32.totalorder %v600, 0
      %vm604 = vcmp.ge.s32.totalorder %v601, 0
      %vm605 = vcmp.lt.s32.totalorder %v599, 16
      %vm606 = vcmp.lt.s32.totalorder %v600, 16
      %vm607 = vcmp.lt.s32.totalorder %v601, 16
      %vm608 = vmand %vm602, %vm605
      %vm609 = vmand %vm603, %vm606
      %vm610 = vmand %vm604, %vm607
      %v611 = vsel %vm608, 1, 0
      %v612 = vsel %vm609, 1, 0
      %v613 = vsel %vm610, 1, 0
      %vm614 = vcmp.eq.s32.totalorder %v611, 1
      %vm615 = vcmp.eq.s32.totalorder %v612, 1
      %vm616 = vcmp.eq.s32.totalorder %v613, 1
      %v617 = vsel %vm614, %v589, 0.0
      %v618 = vsel %vm615, %v590, 0.0
      %v619 = vsel %vm616, %v591, 0.0
      %v620 = vpack.c.bf16 %v618, %v617
      %v621 = vpack.c.bf16 %v619, %v619
      %v623 = vshrl.u32 %v620, 16
      %v625 = vshll.u32 %v620, 16
      %v627 = vrot.slane %v625, 1
      %v628 = vor.u32 %v623, %v627
      %v630 = vshll.u32 %v621, 16
      %v632 = vrot.slane %v630, 1
      %v633 = vsel %vm268, %v628, %v632
      %v637 = vrot.slane %v620, 1
      %v638 = vrot.slane %v621, 1
      %v639 = vsel %vm288, %v637, %v638
      %v641 = vld [vmem:[%s3] sm:$0xf]
      %v642 = vld [vmem:[%s3 + $0x4] sm:$0xf]
      %v643 = vld [vmem:[%s3 + $0x8] sm:$0xf]
      %v644 = vld [vmem:[%s3 + $0xc] sm:$0xf]
      %v645 = vld [vmem:[%s3 + $0x10] sm:$0xf]
      %v646 = vld [vmem:[%s3 + $0x14] sm:$0xf]
      %v647 = vld [vmem:[%s3 + $0x18] sm:$0xf]
      %v648 = vld [vmem:[%s3 + $0x1c] sm:$0xf]
      %v649 = vld [vmem:[%s3 + $0x20] sm:$0xf]
      %v650 = vld [vmem:[%s3 + $0x24] sm:$0xf]
      %v651 = vld [vmem:[%s3 + $0x28] sm:$0xf]
      %v652 = vld [vmem:[%s3 + $0x2c] sm:$0xf]
      %v653 = vld [vmem:[%s3 + $0x30] sm:$0xf]
      %v654 = vld [vmem:[%s3 + $0x34] sm:$0xf]
      %v655 = vld [vmem:[%s3 + $0x38] sm:$0xf]
      %v656 = vld [vmem:[%s3 + $0x3c] sm:$0xf]
      %v657 = vld [vmem:[%s3 + $0x40] sm:$0xf]
      %v658 = vld [vmem:[%s3 + $0x44] sm:$0xf]
      %v659 = vld [vmem:[%s3 + $0x48] sm:$0xf]
      %v660 = vld [vmem:[%s3 + $0x4c] sm:$0xf]
      %v661 = vld [vmem:[%s3 + $0x50] sm:$0xf]
      %v662 = vld [vmem:[%s3 + $0x54] sm:$0xf]
      %v663 = vld [vmem:[%s3 + $0x58] sm:$0xf]
      %v664 = vld [vmem:[%s3 + $0x5c] sm:$0xf]
      %v665 = vld [vmem:[%s3 + $0x60] sm:$0xf]
      %v666 = vld [vmem:[%s3 + $0x64] sm:$0xf]
      %v667 = vld [vmem:[%s3 + $0x68] sm:$0xf]
      %v668 = vld [vmem:[%s3 + $0x6c] sm:$0xf]
      %v669 = vld [vmem:[%s3 + $0x70] sm:$0xf]
      %v670 = vld [vmem:[%s3 + $0x74] sm:$0xf]
      %v671 = vld [vmem:[%s3 + $0x78] sm:$0xf]
      %v672 = vld [vmem:[%s3 + $0x7c] sm:$0xf]
      %v673 = vld [vmem:[%s3 + $0x80] sm:$0xf]
      %v674 = vld [vmem:[%s3 + $0x84] sm:$0xf]
      %v675 = vld [vmem:[%s3 + $0x88] sm:$0xf]
      %v676 = vld [vmem:[%s3 + $0x8c] sm:$0xf]
      %v677 = vld [vmem:[%s3 + $0x90] sm:$0xf]
      %v678 = vld [vmem:[%s3 + $0x94] sm:$0xf]
      %v679 = vld [vmem:[%s3 + $0x98] sm:$0xf]
      %v680 = vld [vmem:[%s3 + $0x9c] sm:$0xf]
      %v681 = vld [vmem:[%s3 + $0xa0] sm:$0xf]
      %v682 = vld [vmem:[%s3 + $0xa4] sm:$0xf]
      %v683 = vld [vmem:[%s3 + $0xa8] sm:$0xf]
      %v684 = vld [vmem:[%s3 + $0xac] sm:$0xf]
      %v685 = vld [vmem:[%s3 + $0xb0] sm:$0xf]
      %v686 = vld [vmem:[%s3 + $0xb4] sm:$0xf]
      %v687 = vld [vmem:[%s3 + $0xb8] sm:$0xf]
      %v688 = vld [vmem:[%s3 + $0xbc] sm:$0xf]
      %v689 = vld [vmem:[%s4] sm:$0x1]
      %v691 = vlaneseq
      %v692 = vshrl.u32 %v691, 7
      %v693 = vsub.s32 0, %v692
      %v694 = vrot.slane %v689, %v693
      %v744 = vunpack.c.l.b16 %v641
      %v745 = vunpack.c.l.b16 %v642
      %v746 = vunpack.c.l.b16 %v643
      %v747 = vunpack.c.l.b16 %v644
      %v748 = vunpack.c.l.b16 %v645
      %v749 = vunpack.c.l.b16 %v646
      %v750 = vunpack.c.l.b16 %v647
      %v751 = vunpack.c.l.b16 %v648
      %v752 = vunpack.c.l.b16 %v649
      %v753 = vunpack.c.l.b16 %v650
      %v754 = vunpack.c.l.b16 %v651
      %v755 = vunpack.c.l.b16 %v652
      %v756 = vunpack.c.l.b16 %v653
      %v757 = vunpack.c.l.b16 %v654
      %v758 = vunpack.c.l.b16 %v655
      %v759 = vunpack.c.l.b16 %v656
      %v760 = vunpack.c.l.b16 %v657
      %v761 = vunpack.c.l.b16 %v658
      %v762 = vunpack.c.l.b16 %v659
      %v763 = vunpack.c.l.b16 %v660
      %v764 = vunpack.c.l.b16 %v661
      %v765 = vunpack.c.l.b16 %v662
      %v766 = vunpack.c.l.b16 %v663
      %v767 = vunpack.c.l.b16 %v664
      %v768 = vunpack.c.l.b16 %v665
      %v769 = vunpack.c.l.b16 %v666
      %v770 = vunpack.c.l.b16 %v667
      %v771 = vunpack.c.l.b16 %v668
      %v772 = vunpack.c.l.b16 %v669
      %v773 = vunpack.c.l.b16 %v670
      %v774 = vunpack.c.l.b16 %v671
      %v775 = vunpack.c.l.b16 %v672
      %v776 = vunpack.c.l.b16 %v673
      %v777 = vunpack.c.l.b16 %v674
      %v778 = vunpack.c.l.b16 %v675
      %v779 = vunpack.c.l.b16 %v676
      %v780 = vunpack.c.l.b16 %v677
      %v781 = vunpack.c.l.b16 %v678
      %v782 = vunpack.c.l.b16 %v679
      %v783 = vunpack.c.l.b16 %v680
      %v784 = vunpack.c.l.b16 %v681
      %v785 = vunpack.c.l.b16 %v682
      %v786 = vunpack.c.l.b16 %v683
      %v787 = vunpack.c.l.b16 %v684
      %v788 = vunpack.c.l.b16 %v685
      %v789 = vunpack.c.l.b16 %v686
      %v790 = vunpack.c.l.b16 %v687
      %v791 = vunpack.c.l.b16 %v688
      %v792 = vpack.c.b16 %v745, %v744
      %v793 = vpack.c.b16 %v747, %v746
      %v794 = vpack.c.b16 %v749, %v748
      %v795 = vpack.c.b16 %v751, %v750
      %v796 = vpack.c.b16 %v753, %v752
      %v797 = vpack.c.b16 %v755, %v754
      %v798 = vpack.c.b16 %v757, %v756
      %v799 = vpack.c.b16 %v759, %v758
      %v800 = vpack.c.b16 %v761, %v760
      %v801 = vpack.c.b16 %v763, %v762
      %v802 = vpack.c.b16 %v765, %v764
      %v803 = vpack.c.b16 %v767, %v766
      %v804 = vpack.c.b16 %v769, %v768
      %v805 = vpack.c.b16 %v771, %v770
      %v806 = vpack.c.b16 %v773, %v772
      %v807 = vpack.c.b16 %v775, %v774
      %v808 = vpack.c.b16 %v777, %v776
      %v809 = vpack.c.b16 %v779, %v778
      %v810 = vpack.c.b16 %v781, %v780
      %v811 = vpack.c.b16 %v783, %v782
      %v812 = vpack.c.b16 %v785, %v784
      %v813 = vpack.c.b16 %v787, %v786
      %v814 = vpack.c.b16 %v789, %v788
      %v815 = vpack.c.b16 %v791, %v790
      %840 = vmatprep.subr.bf16.mxu0 0
      %841 = vmatpush1.bf16.msra.mxu0 %v792
      %842 = vmatprep.subr.bf16.mxu0 0
      %843 = vmatpush1.bf16.msra.mxu0 %v793
      %844 = vmatprep.subr.bf16.mxu0 0
      %845 = vmatpush1.bf16.msra.mxu0 %v794
      %846 = vmatprep.subr.bf16.mxu0 0
      %847 = vmatpush1.bf16.msra.mxu0 %v795
      %848 = vmatprep.subr.bf16.mxu0 0
      %849 = vmatpush1.bf16.msra.mxu0 %v796
      %850 = vmatprep.subr.bf16.mxu0 0
      %851 = vmatpush1.bf16.msra.mxu0 %v797
      %852 = vmatprep.subr.bf16.mxu0 0
      %853 = vmatpush1.bf16.msra.mxu0 %v798
      %854 = vmatprep.subr.bf16.mxu0 0
      %855 = vmatpush1.bf16.msra.mxu0 %v799
      %856 = vmatprep.subr.bf16.mxu0 0
      %857 = vmatpush1.bf16.msra.mxu0 %v800
      %858 = vmatprep.subr.bf16.mxu0 0
      %859 = vmatpush1.bf16.msra.mxu0 %v801
      %860 = vmatprep.subr.bf16.mxu0 0
      %861 = vmatpush1.bf16.msra.mxu0 %v802
      %862 = vmatprep.subr.bf16.mxu0 0
      %863 = vmatpush1.bf16.msra.mxu0 %v803
      %864 = vmatprep.subr.bf16.mxu0 0
      %865 = vmatpush1.bf16.msra.mxu0 %v804
      %866 = vmatprep.subr.bf16.mxu0 0
      %867 = vmatpush1.bf16.msra.mxu0 %v805
      %868 = vmatprep.subr.bf16.mxu0 0
      %869 = vmatpush1.bf16.msra.mxu0 %v806
      %870 = vmatprep.subr.bf16.mxu0 0
      %871 = vmatpush1.bf16.msra.mxu0 %v807
      %872 = vmatprep.mubr.bf16.mxu0 %v633
      %873 = vmatmul.mubr.bf16.gmra.mrb[0].mxu0 %v620
      %v874 = vpop.f32.mrb[0].mxu0
      %v875 = vadd.f32 %v694, %v874
      %v876 = vpop.f32.mrb[0].mxu0
      %v877 = vpop.f32.mrb[0].mxu0
      %v878 = vadd.f32 %v694, %v877
      %v879 = vpop.f32.mrb[0].mxu0
      %880 = vdwg.mxu0
      %881 = vmatprep.subr.bf16.mxu0 0
      %882 = vmatpush1.bf16.msra.mxu0 %v808
      %883 = vmatprep.subr.bf16.mxu0 0
      %884 = vmatpush1.bf16.msra.mxu0 %v809
      %885 = vmatprep.subr.bf16.mxu0 0
      %886 = vmatpush1.bf16.msra.mxu0 %v810
      %887 = vmatprep.subr.bf16.mxu0 0
      %888 = vmatpush1.bf16.msra.mxu0 %v811
      %889 = vmatprep.subr.bf16.mxu0 0
      %890 = vmatpush1.bf16.msra.mxu0 %v812
      %891 = vmatprep.subr.bf16.mxu0 0
      %892 = vmatpush1.bf16.msra.mxu0 %v813
      %893 = vmatprep.subr.bf16.mxu0 0
      %894 = vmatpush1.bf16.msra.mxu0 %v814
      %895 = vmatprep.subr.bf16.mxu0 0
      %896 = vmatpush1.bf16.msra.mxu0 %v815
      %897 = vmatprep.subr.bf16.mxu0 0
      %898 = vmatpush1.bf16.msra.mxu0 0
      %899 = vmatprep.subr.bf16.mxu0 0
      %900 = vmatpush1.bf16.msra.mxu0 0
      %901 = vmatprep.subr.bf16.mxu0 0
      %902 = vmatpush1.bf16.msra.mxu0 0
      %903 = vmatprep.subr.bf16.mxu0 0
      %904 = vmatpush1.bf16.msra.mxu0 0
      %905 = vmatprep.subr.bf16.mxu0 0
      %906 = vmatpush1.bf16.msra.mxu0 0
      %907 = vmatprep.subr.bf16.mxu0 0
      %908 = vmatpush1.bf16.msra.mxu0 0
      %909 = vmatprep.subr.bf16.mxu0 0
      %910 = vmatpush1.bf16.msra.mxu0 0
      %911 = vmatprep.subr.bf16.mxu0 0
      %912 = vmatpush1.bf16.msra.mxu0 0
      %913 = vmatprep.mubr.bf16.mxu0 0
      %914 = vmatmul.mubr.bf16.gmra.mrb[0].mxu0 %v639
      %v915 = vpop.f32.mrb[0].mxu0
      %v916 = vadd.f32 %v875, %v915
      %v917 = vpop.f32.mrb[0].mxu0
      %v918 = vpop.f32.mrb[0].mxu0
      %v919 = vadd.f32 %v878, %v918
      %v920 = vpop.f32.mrb[0].mxu0
      %921 = vdwg.mxu0
      %vm925 = vcmask 1045504
      %v926 = vrot.slane %v263, 2
      %v927 = vrot.slane %v264, 2
      %v928 = vsel %vm925, %v926, %v927
      %v929 = vrot.slane %v265, 2
      %v930 = vsel %vm925, %v927, %v929
      %v933 = vadd.f32 %v916, %v928
      %v934 = vadd.f32 %v919, %v930
      %v935 = vmax.f32 %v933, 0.0
      %v936 = vmax.f32 %v934, 0.0
      %937 = vst [vmem:[%s260] sm:$0xff] %v935
      %938 = vst [vmem:[%s260 + $0x8] sm:$0xff] %v936
      %s939 = smul.u32 2, %s21
      %p940 = scmp.lt.s32.totalorder %s20, 1
      %s941 = scalar_select %p940, %s20, 1
      %p942 = scmp.lt.s32.totalorder %s939, 1
      %s943 = scalar_select %p942, %s939, 1
      %s944 = smul.addr %s941, 2
      %s945 = sadd.s32 %s943, %s944
      %s946 = smul.addr %s945, 8
      %s947 = scalar_lea.vmem %s5, %s946
      // Predicated region
      $region41: #{lower_basic_block.1} parent=39 // pred_check
        %p948 = pneg %p160
      $region42: #{lower_basic_block.1} parent=39 // pred_check_branch
        %950 = sbr.rel (%p948) target = $region44
      $region43: #{lower_basic_block.1} parent=39 // pred_region
        %s951 = smul.u32 2, %s21
      $region44: #{lower_basic_block.1} parent=39 // pred_fallthru
        _
    $region40: #{lower_basic_block.1} parent=5 // pred_fallthru
      _
    %p952 = scmp.le.s32.totalorder 2, %s11
    // Predicated region
    $region45: #{lower_basic_block.1} parent=5 // pred_check
      %p953 = pneg %p952
    $region46: #{lower_basic_block.1} parent=5 // pred_check_branch
      %955 = sbr.rel (%p953) target = $region48
    $region47: #{lower_basic_block.1} parent=5 // pred_region
      %s956 = ssub.s32 %s11, 2
      // Predicated region
      $region49: #{lower_basic_block.1} parent=47 // pred_check
        %p957 = pneg %p166
      $region50: #{lower_basic_block.1} parent=47 // pred_check_branch
        %959 = sbr.rel (%p957) target = $region52
      $region51: #{lower_basic_block.1} parent=47 // pred_region
        %s960 = smul.u32 2, %s23
        %p961 = scmp.lt.s32.totalorder %s22, 1
        %s962 = scalar_select %p961, %s22, 1
        %p963 = scmp.lt.s32.totalorder %s960, 1
        %s964 = scalar_select %p963, %s960, 1
        %s965 = smul.addr %s962, 2
        %s966 = sadd.s32 %s964, %s965
        %s967 = smul.addr %s966, 8
        %s968 = scalar_lea.vmem %s5, %s967
      $region52: #{lower_basic_block.1} parent=47 // pred_fallthru
        _
    $region48: #{lower_basic_block.1} parent=5 // pred_fallthru
      _
  $region6: #{lower_basic_block.1} parent=0 // loop_footer
    %s15 = sadd.s32 1, %s11
  $region7: #{lower_basic_block.1} parent=0 // loop_footer_branch
    %10 = sbr.rel target = $region3
  $region8: #{lower_basic_block.1} parent=0 // loop_exit
    _

</llo_original>
